<compile_context>
chip_gen: v5e
topology: v5e:2x2
jax: 0.10.0
libtpu: 0.0.40
codegen_flags: <defaults>
</compile_context>

<pallas_src>
import functools

import jax
import jax.numpy as jnp
from jax.experimental import pallas as pl
from jax.experimental.pallas import tpu as pltpu


# --------------------- attention sublayer (norm + MHA + residual) -----------
def _attn_kernel(x_ref, g_ref, wq_ref, wk_ref, wv_ref, wo_ref, o_ref,
                 xn_ref, acc_ref, *, eps, scale):
    h = pl.program_id(1)
    n_heads = pl.num_programs(1)

    # Fused RMSNorm + accumulator init, once per batch element.
    @pl.when(h == 0)
    def _():
        xf = x_ref[0].astype(jnp.float32)                       # (T, D)
        ms = jnp.mean(xf * xf, axis=-1, keepdims=True)
        xn_ref[...] = (xf * g_ref[...].astype(jnp.float32)
                       * jax.lax.rsqrt(ms + eps)).astype(xn_ref.dtype)
        acc_ref[...] = jnp.zeros_like(acc_ref)

    xn = xn_ref[...]                                            # (T, D)
    qh = jnp.dot(xn, wq_ref[0], preferred_element_type=jnp.float32)  # (T, hd)
    kh = jnp.dot(xn, wk_ref[0], preferred_element_type=jnp.float32)
    vh = jnp.dot(xn, wv_ref[0], preferred_element_type=jnp.float32)

    # scores = q @ k^T  (contract on hd without materializing a transpose)
    s = jax.lax.dot_general(qh, kh, (((1,), (1,)), ((), ())),
                            preferred_element_type=jnp.float32) * scale
    row = jax.lax.broadcasted_iota(jnp.int32, s.shape, 0)
    col = jax.lax.broadcasted_iota(jnp.int32, s.shape, 1)
    s = jnp.where(row >= col, s, jnp.finfo(jnp.float32).min)

    # softmax with EUP reciprocal
    m = jnp.max(s, axis=-1, keepdims=True)
    p = jnp.exp(s - m)
    l = jnp.sum(p, axis=-1, keepdims=True)
    p = p * pl.reciprocal(l, approx=True)

    ctx = jnp.dot(p, vh, preferred_element_type=jnp.float32)    # (T, hd)
    acc_ref[...] += jnp.dot(ctx.astype(wo_ref.dtype), wo_ref[0],
                            preferred_element_type=jnp.float32)  # (T, D)

    @pl.when(h == n_heads - 1)
    def _():
        o_ref[0] = (x_ref[0].astype(jnp.float32) + acc_ref[...]).astype(o_ref.dtype)


def attn_block(x, gnorm, wq_h, wk_h, wv_h, wo_h, *, eps):
    B, T, D = x.shape
    H, _, hd = wq_h.shape
    scale = 1.0 / (hd ** 0.5)
    return pl.pallas_call(
        functools.partial(_attn_kernel, eps=eps, scale=scale),
        out_shape=jax.ShapeDtypeStruct((B, T, D), x.dtype),
        grid=(B, H),
        in_specs=[
            pl.BlockSpec((1, T, D), lambda b, h: (b, 0, 0)),    # x (residual)
            pl.BlockSpec((1, D), lambda b, h: (0, 0)),          # attn_norm gain
            pl.BlockSpec((1, D, hd), lambda b, h: (h, 0, 0)),   # wq (head h)
            pl.BlockSpec((1, D, hd), lambda b, h: (h, 0, 0)),   # wk (head h)
            pl.BlockSpec((1, D, hd), lambda b, h: (h, 0, 0)),   # wv (head h)
            pl.BlockSpec((1, hd, D), lambda b, h: (h, 0, 0)),   # wo (head h)
        ],
        out_specs=pl.BlockSpec((1, T, D), lambda b, h: (b, 0, 0)),
        scratch_shapes=[pltpu.VMEM((T, D), x.dtype),            # xn
                        pltpu.VMEM((T, D), jnp.float32)],       # acc
        compiler_params=pltpu.CompilerParams(
            dimension_semantics=("parallel", "arbitrary")),
    )(x, gnorm.reshape(1, D), wq_h, wk_h, wv_h, wo_h)


# -------------------- MoE sublayer (norm + experts + residual) --------------
def _moe_kernel(gates_ref, x_ref, g_ref, w1_ref, w3_ref, w2_ref, o_ref,
                xn_ref, acc_ref, *, eps):
    e = pl.program_id(1)
    n_e = pl.num_programs(1)

    # Fused RMSNorm + accumulator init, once per token tile.
    @pl.when(e == 0)
    def _():
        xf = x_ref[...].astype(jnp.float32)                     # (TN, D)
        ms = jnp.mean(xf * xf, axis=-1, keepdims=True)
        xn_ref[...] = (xf * g_ref[...].astype(jnp.float32)
                       * jax.lax.rsqrt(ms + eps)).astype(xn_ref.dtype)
        acc_ref[...] = jnp.zeros_like(acc_ref)

    xn = xn_ref[...]                                            # (TN, D)
    w1 = w1_ref[0]                                              # (D, F)
    w3 = w3_ref[0]                                              # (D, F)
    w2 = w2_ref[0]                                              # (F, D)

    h1 = jnp.dot(xn, w1, preferred_element_type=jnp.float32)
    h3 = jnp.dot(xn, w3, preferred_element_type=jnp.float32)
    act = (h1 * jax.nn.sigmoid(h1)) * h3                        # SwiGLU, f32

    gate = gates_ref[0].astype(jnp.float32)                     # (TN, 1)
    act = jnp.where(gate > 0.0, act, 0.0)                       # guard 0*inf
    out_e = jnp.dot(act.astype(w2.dtype), w2,
                    preferred_element_type=jnp.float32)         # (TN, D)
    acc_ref[...] += gate * out_e                                # f32 accumulate

    @pl.when(e == n_e - 1)
    def _():
        o_ref[...] = (x_ref[...].astype(jnp.float32) + acc_ref[...]).astype(o_ref.dtype)


def moe_block(gates_t, x_flat, gnorm, w1s, w3s, w2s, *, eps, tn):
    N, D = x_flat.shape
    E1, _, F = w1s.shape
    n_tiles = N // tn
    return pl.pallas_call(
        functools.partial(_moe_kernel, eps=eps),
        out_shape=jax.ShapeDtypeStruct((N, D), x_flat.dtype),
        grid=(n_tiles, E1),
        in_specs=[
            pl.BlockSpec((1, tn, 1), lambda t, e: (e, t, 0)),   # gates (E1,N,1)
            pl.BlockSpec((tn, D), lambda t, e: (t, 0)),         # x (residual)
            pl.BlockSpec((1, D), lambda t, e: (0, 0)),          # moe_norm gain
            pl.BlockSpec((1, D, F), lambda t, e: (e, 0, 0)),    # w1
            pl.BlockSpec((1, D, F), lambda t, e: (e, 0, 0)),    # w3
            pl.BlockSpec((1, F, D), lambda t, e: (e, 0, 0)),    # w2
        ],
        out_specs=pl.BlockSpec((tn, D), lambda t, e: (t, 0)),
        scratch_shapes=[pltpu.VMEM((tn, D), x_flat.dtype),      # xn
                        pltpu.VMEM((tn, D), jnp.float32)],      # acc
        compiler_params=pltpu.CompilerParams(
            dimension_semantics=("parallel", "arbitrary")),
    )(gates_t, x_flat, gnorm.reshape(1, D), w1s, w3s, w2s)


# ------------------------------ glue / routing ------------------------------
def _router_gates(xn_flat, wr, top_k):
    # Small routing math kept in plain JAX (glue).
    N, _ = xn_flat.shape
    E = wr.shape[1]
    scores = xn_flat @ wr                                       # (N, E)
    probs = jax.nn.softmax(scores, axis=-1)
    topv, topi = jax.lax.top_k(probs, top_k)
    topv = topv / jnp.sum(topv, axis=-1, keepdims=True)
    gates = jnp.zeros((N, E), jnp.float32)
    gates = gates.at[jnp.arange(N)[:, None], topi].set(topv)
    shared = jnp.ones((N, 1), jnp.float32)                      # shared expert
    dense = jnp.concatenate([gates, shared], axis=-1)           # (N, E+1)
    return jnp.transpose(dense)[:, :, None]                     # (E+1, N, 1)


def block_forward(x, params, *, n_heads, top_k, eps=1e-6):
    B, T, D = x.shape
    N = B * T
    H = n_heads
    hd = D // H

    # One-time head-major weight re-layout (plain JAX, outside the kernels).
    wq_h = params["wq"].reshape(D, H, hd).transpose(1, 0, 2)    # (H, D, hd)
    wk_h = params["wk"].reshape(D, H, hd).transpose(1, 0, 2)
    wv_h = params["wv"].reshape(D, H, hd).transpose(1, 0, 2)
    wo_h = params["wo"].reshape(H, hd, D)                       # (H, hd, D)

    # x = x + attn(attn_norm(x))      (attn_norm fused in-kernel)
    x = attn_block(x, params["attn_norm_g"], wq_h, wk_h, wv_h, wo_h, eps=eps)

    # x = x + moe(moe_norm(x))        (moe_norm fused in-kernel)
    x_flat = x.reshape(N, D)
    xf = x_flat.astype(jnp.float32)
    xn_router = xf * params["moe_norm_g"] * jax.lax.rsqrt(
        jnp.mean(xf * xf, axis=-1, keepdims=True) + eps)        # router-only norm
    gates_t = _router_gates(xn_router, params["wr"], top_k)

    tn = N if N <= 512 else 512
    assert N % tn == 0
    x_flat = moe_block(gates_t, x_flat, params["moe_norm_g"],
                       params["w1"], params["w3"], params["w2"], eps=eps, tn=tn)
    return x_flat.reshape(B, T, D)


# ---------------------------------- main ------------------------------------
if __name__ == "__main__":
    B, T, D = 2, 8, 32
    H = 4            # attention heads
    E = 4            # routed experts
    TOP_K = 2
    F = 16           # expert FFN width

    key = jax.random.PRNGKey(0)
    ks = jax.random.split(key, 10)
    s = 0.05

    x = jax.random.normal(ks[0], (B, T, D), jnp.float32)

    params = {
        "attn_norm_g": jnp.ones((D,), jnp.float32),
        "moe_norm_g": jnp.ones((D,), jnp.float32),
        "wq": s * jax.random.normal(ks[1], (D, D), jnp.float32),
        "wk": s * jax.random.normal(ks[2], (D, D), jnp.float32),
        "wv": s * jax.random.normal(ks[3], (D, D), jnp.float32),
        "wo": s * jax.random.normal(ks[4], (D, D), jnp.float32),
        "wr": s * jax.random.normal(ks[5], (D, E), jnp.float32),
        "w1": s * jax.random.normal(ks[6], (E + 1, D, F), jnp.float32),
        "w3": s * jax.random.normal(ks[7], (E + 1, D, F), jnp.float32),
        "w2": s * jax.random.normal(ks[8], (E + 1, F, D), jnp.float32),
    }

    out = block_forward(x, params, n_heads=H, top_k=TOP_K)
    out = jax.block_until_ready(out)
    assert out.shape == (B, T, D)
    assert bool(jnp.all(jnp.isfinite(out)))
    print("KERNEL_OK")
</pallas_src>

<mosaic_0001>
module attributes {stable_mosaic.version = 11 : i64} {
  func.func @_attn_kernel(%arg0: i32, %arg1: i32, %arg2: memref<1x8x32xf32, #tpu.memory_space<vmem>>, %arg3: memref<1x32xf32, #tpu.memory_space<vmem>>, %arg4: memref<1x32x8xf32, #tpu.memory_space<vmem>>, %arg5: memref<1x32x8xf32, #tpu.memory_space<vmem>>, %arg6: memref<1x32x8xf32, #tpu.memory_space<vmem>>, %arg7: memref<1x8x32xf32, #tpu.memory_space<vmem>>, %arg8: memref<1x8x32xf32, #tpu.memory_space<vmem>>, %arg9: memref<8x32xf32, #tpu.memory_space<vmem>>, %arg10: memref<8x32xf32, #tpu.memory_space<vmem>>) attributes {dimension_semantics = [#tpu.dimension_semantics<parallel>, #tpu.dimension_semantics<arbitrary>], iteration_bounds = array<i64: 2, 4>, scalar_prefetch = 0 : i64, scratch_operands = 2 : i64, tpu.core_type = #tpu.core_type<tc>, window_params = [{transform_indices = @transform_0, window_bounds = array<i64: 1, 8, 32>}, {pipeline_mode = #tpu.pipeline_mode<synchronous>, transform_indices = @transform_1, window_bounds = array<i64: 1, 32>}, {transform_indices = @transform_2, window_bounds = array<i64: 1, 32, 8>}, {transform_indices = @transform_3, window_bounds = array<i64: 1, 32, 8>}, {transform_indices = @transform_4, window_bounds = array<i64: 1, 32, 8>}, {transform_indices = @transform_5, window_bounds = array<i64: 1, 8, 32>}, {transform_indices = @transform_6, window_bounds = array<i64: 1, 8, 32>}]} {
    %c0_i32 = arith.constant 0 : i32
    %0 = arith.cmpi eq, %arg1, %c0_i32 : i32
    %1 = arith.extui %0 : i1 to i32
    %c0_i32_0 = arith.constant 0 : i32
    %2 = arith.cmpi ne, %1, %c0_i32_0 : i32
    scf.if %2 {
      %c0_28 = arith.constant 0 : index
      %c0_29 = arith.constant 0 : index
      %c0_30 = arith.constant 0 : index
      %41 = vector.load %arg2[%c0_28, %c0_29, %c0_30] : memref<1x8x32xf32, #tpu.memory_space<vmem>>, vector<1x8x32xf32>
      %42 = vector.shape_cast %41 : vector<1x8x32xf32> to vector<8x32xf32>
      %43 = arith.mulf %42, %42 : vector<8x32xf32>
      %cst_31 = arith.constant dense<0.000000e+00> : vector<8xf32>
      %44 = vector.multi_reduction <add>, %43, %cst_31 [1] : vector<8x32xf32> to vector<8xf32>
      %45 = vector.shape_cast %44 : vector<8xf32> to vector<8x1xf32>
      %cst_32 = arith.constant 3.200000e+01 : f32
      %46 = vector.broadcast %cst_32 : f32 to vector<8x1xf32>
      %47 = arith.divf %45, %46 : vector<8x1xf32>
      %c0_33 = arith.constant 0 : index
      %c0_34 = arith.constant 0 : index
      %48 = vector.load %arg3[%c0_33, %c0_34] : memref<1x32xf32, #tpu.memory_space<vmem>>, vector<1x32xf32>
      %49 = vector.broadcast %48 : vector<1x32xf32> to vector<8x32xf32>
      %50 = arith.mulf %42, %49 : vector<8x32xf32>
      %cst_35 = arith.constant 9.99999997E-7 : f32
      %51 = vector.broadcast %cst_35 : f32 to vector<8x1xf32>
      %52 = arith.addf %47, %51 : vector<8x1xf32>
      %53 = math.rsqrt %52 : vector<8x1xf32>
      %54 = vector.broadcast %53 : vector<8x1xf32> to vector<8x32xf32>
      %55 = arith.mulf %50, %54 : vector<8x32xf32>
      %c0_36 = arith.constant 0 : index
      %c0_37 = arith.constant 0 : index
      %56 = vector.load %arg9[%c0_36, %c0_37] : memref<8x32xf32, #tpu.memory_space<vmem>>, vector<8x32xf32>
      tpu.vector_store %arg9[%c0_36, %c0_37], %55 {strides = array<i32>} : memref<8x32xf32, #tpu.memory_space<vmem>>, vector<8x32xf32>,
      %cst_38 = arith.constant 0.000000e+00 : f32
      %57 = vector.broadcast %cst_38 : f32 to vector<8x32xf32>
      %c0_39 = arith.constant 0 : index
      %c0_40 = arith.constant 0 : index
      %58 = vector.load %arg10[%c0_39, %c0_40] : memref<8x32xf32, #tpu.memory_space<vmem>>, vector<8x32xf32>
      tpu.vector_store %arg10[%c0_39, %c0_40], %57 {strides = array<i32>} : memref<8x32xf32, #tpu.memory_space<vmem>>, vector<8x32xf32>,
    } else {
    }
    %c0 = arith.constant 0 : index
    %c0_1 = arith.constant 0 : index
    %3 = vector.load %arg9[%c0, %c0_1] : memref<8x32xf32, #tpu.memory_space<vmem>>, vector<8x32xf32>
    %c0_2 = arith.constant 0 : index
    %c0_3 = arith.constant 0 : index
    %c0_4 = arith.constant 0 : index
    %4 = vector.load %arg4[%c0_2, %c0_3, %c0_4] : memref<1x32x8xf32, #tpu.memory_space<vmem>>, vector<1x32x8xf32>
    %5 = vector.shape_cast %4 : vector<1x32x8xf32> to vector<32x8xf32>
    %cst = arith.constant dense<0.000000e+00> : vector<8x8xf32>
    %6 = tpu.matmul %3, %5, %cst {dimension_numbers = #tpu.dot_dimension_numbers<[1], [0], [0], [1], [0, 0, 1, 1], [], []>} : vector<8x32xf32>, vector<32x8xf32>, vector<8x8xf32> -> vector<8x8xf32>
    %c0_5 = arith.constant 0 : index
    %c0_6 = arith.constant 0 : index
    %c0_7 = arith.constant 0 : index
    %7 = vector.load %arg5[%c0_5, %c0_6, %c0_7] : memref<1x32x8xf32, #tpu.memory_space<vmem>>, vector<1x32x8xf32>
    %8 = vector.shape_cast %7 : vector<1x32x8xf32> to vector<32x8xf32>
    %cst_8 = arith.constant dense<0.000000e+00> : vector<8x8xf32>
    %9 = tpu.matmul %3, %8, %cst_8 {dimension_numbers = #tpu.dot_dimension_numbers<[1], [0], [0], [1], [0, 0, 1, 1], [], []>} : vector<8x32xf32>, vector<32x8xf32>, vector<8x8xf32> -> vector<8x8xf32>
    %c0_9 = arith.constant 0 : index
    %c0_10 = arith.constant 0 : index
    %c0_11 = arith.constant 0 : index
    %10 = vector.load %arg6[%c0_9, %c0_10, %c0_11] : memref<1x32x8xf32, #tpu.memory_space<vmem>>, vector<1x32x8xf32>
    %11 = vector.shape_cast %10 : vector<1x32x8xf32> to vector<32x8xf32>
    %cst_12 = arith.constant dense<0.000000e+00> : vector<8x8xf32>
    %12 = tpu.matmul %3, %11, %cst_12 {dimension_numbers = #tpu.dot_dimension_numbers<[1], [0], [0], [1], [0, 0, 1, 1], [], []>} : vector<8x32xf32>, vector<32x8xf32>, vector<8x8xf32> -> vector<8x8xf32>
    %cst_13 = arith.constant dense<0.000000e+00> : vector<8x8xf32>
    %13 = tpu.matmul %6, %9, %cst_13 {dimension_numbers = #tpu.dot_dimension_numbers<[1], [1], [0], [0], [0, 0, 1, 0], [], []>} : vector<8x8xf32>, vector<8x8xf32>, vector<8x8xf32> -> vector<8x8xf32>
    %cst_14 = arith.constant 0.353553385 : f32
    %14 = vector.broadcast %cst_14 : f32 to vector<8x8xf32>
    %15 = arith.mulf %13, %14 : vector<8x8xf32>
    %16 = tpu.iota {dimensions = array<i32: 0>} : vector<8x8xi32>
    %17 = tpu.iota {dimensions = array<i32: 1>} : vector<8x8xi32>
    %18 = arith.cmpi sge, %16, %17 : vector<8x8xi32>
    %cst_15 = arith.constant -3.40282347E+38 : f32
    %19 = vector.broadcast %cst_15 : f32 to vector<8x8xf32>
    %20 = arith.select %18, %15, %19 : vector<8x8xi1>, vector<8x8xf32>
    %cst_16 = arith.constant dense<0xFF800000> : vector<8xf32>
    %21 = vector.multi_reduction <maximumf>, %20, %cst_16 [1] : vector<8x8xf32> to vector<8xf32>
    %22 = vector.shape_cast %21 : vector<8xf32> to vector<8x1xf32>
    %23 = vector.broadcast %22 : vector<8x1xf32> to vector<8x8xf32>
    %24 = arith.subf %20, %23 : vector<8x8xf32>
    %25 = math.exp %24 : vector<8x8xf32>
    %cst_17 = arith.constant dense<0.000000e+00> : vector<8xf32>
    %26 = vector.multi_reduction <add>, %25, %cst_17 [1] : vector<8x8xf32> to vector<8xf32>
    %27 = vector.shape_cast %26 : vector<8xf32> to vector<8x1xf32>
    %28 = tpu.reciprocal %27 {approx = true} : vector<8x1xf32> -> vector<8x1xf32>
    %29 = vector.broadcast %28 : vector<8x1xf32> to vector<8x8xf32>
    %30 = arith.mulf %25, %29 : vector<8x8xf32>
    %cst_18 = arith.constant dense<0.000000e+00> : vector<8x8xf32>
    %31 = tpu.matmul %30, %12, %cst_18 {dimension_numbers = #tpu.dot_dimension_numbers<[1], [0], [0], [1], [0, 0, 1, 1], [], []>} : vector<8x8xf32>, vector<8x8xf32>, vector<8x8xf32> -> vector<8x8xf32>
    %c0_19 = arith.constant 0 : index
    %c0_20 = arith.constant 0 : index
    %32 = vector.load %arg10[%c0_19, %c0_20] : memref<8x32xf32, #tpu.memory_space<vmem>>, vector<8x32xf32>
    %c0_21 = arith.constant 0 : index
    %c0_22 = arith.constant 0 : index
    %c0_23 = arith.constant 0 : index
    %33 = vector.load %arg7[%c0_21, %c0_22, %c0_23] : memref<1x8x32xf32, #tpu.memory_space<vmem>>, vector<1x8x32xf32>
    %34 = vector.shape_cast %33 : vector<1x8x32xf32> to vector<8x32xf32>
    %cst_24 = arith.constant dense<0.000000e+00> : vector<8x32xf32>
    %35 = tpu.matmul %31, %34, %cst_24 {dimension_numbers = #tpu.dot_dimension_numbers<[1], [0], [0], [1], [0, 0, 1, 1], [], []>} : vector<8x8xf32>, vector<8x32xf32>, vector<8x32xf32> -> vector<8x32xf32>
    %36 = arith.addf %32, %35 : vector<8x32xf32>
    %c0_25 = arith.constant 0 : index
    %c0_26 = arith.constant 0 : index
    %37 = vector.load %arg10[%c0_25, %c0_26] : memref<8x32xf32, #tpu.memory_space<vmem>>, vector<8x32xf32>
    tpu.vector_store %arg10[%c0_25, %c0_26], %36 {strides = array<i32>} : memref<8x32xf32, #tpu.memory_space<vmem>>, vector<8x32xf32>,
    %c3_i32 = arith.constant 3 : i32
    %38 = arith.cmpi eq, %arg1, %c3_i32 : i32
    %39 = arith.extui %38 : i1 to i32
    %c0_i32_27 = arith.constant 0 : i32
    %40 = arith.cmpi ne, %39, %c0_i32_27 : i32
    scf.if %40 {
      %c0_28 = arith.constant 0 : index
      %c0_29 = arith.constant 0 : index
      %c0_30 = arith.constant 0 : index
      %41 = vector.load %arg2[%c0_28, %c0_29, %c0_30] : memref<1x8x32xf32, #tpu.memory_space<vmem>>, vector<1x8x32xf32>
      %42 = vector.shape_cast %41 : vector<1x8x32xf32> to vector<8x32xf32>
      %c0_31 = arith.constant 0 : index
      %c0_32 = arith.constant 0 : index
      %43 = vector.load %arg10[%c0_31, %c0_32] : memref<8x32xf32, #tpu.memory_space<vmem>>, vector<8x32xf32>
      %44 = arith.addf %42, %43 : vector<8x32xf32>
      %c0_33 = arith.constant 0 : index
      %c0_34 = arith.constant 0 : index
      %c0_35 = arith.constant 0 : index
      %45 = vector.load %arg8[%c0_33, %c0_34, %c0_35] : memref<1x8x32xf32, #tpu.memory_space<vmem>>, vector<1x8x32xf32>
      %46 = vector.shape_cast %45 : vector<1x8x32xf32> to vector<8x32xf32>
      %47 = vector.shape_cast %44 : vector<8x32xf32> to vector<1x8x32xf32>
      tpu.vector_store %arg8[%c0_33, %c0_34, %c0_35], %47 {strides = array<i32>} : memref<1x8x32xf32, #tpu.memory_space<vmem>>, vector<1x8x32xf32>,
    } else {
    }
    return
  }
  func.func @transform_0(%arg0: i32, %arg1: i32) -> (i32, i32, i32) {
    %c0_i32 = arith.constant 0 : i32
    %c0_i32_0 = arith.constant 0 : i32
    %c0_i32_1 = arith.constant 0 : i32
    return %arg0, %c0_i32, %c0_i32_0 : i32, i32, i32
  }
  func.func @transform_1(%arg0: i32, %arg1: i32) -> (i32, i32) {
    %c0_i32 = arith.constant 0 : i32
    %c0_i32_0 = arith.constant 0 : i32
    %c0_i32_1 = arith.constant 0 : i32
    return %c0_i32, %c0_i32_0 : i32, i32
  }
  func.func @transform_2(%arg0: i32, %arg1: i32) -> (i32, i32, i32) {
    %c0_i32 = arith.constant 0 : i32
    %c0_i32_0 = arith.constant 0 : i32
    %c0_i32_1 = arith.constant 0 : i32
    return %arg1, %c0_i32, %c0_i32_0 : i32, i32, i32
  }
  func.func @transform_3(%arg0: i32, %arg1: i32) -> (i32, i32, i32) {
    %c0_i32 = arith.constant 0 : i32
    %c0_i32_0 = arith.constant 0 : i32
    %c0_i32_1 = arith.constant 0 : i32
    return %arg1, %c0_i32, %c0_i32_0 : i32, i32, i32
  }
  func.func @transform_4(%arg0: i32, %arg1: i32) -> (i32, i32, i32) {
    %c0_i32 = arith.constant 0 : i32
    %c0_i32_0 = arith.constant 0 : i32
    %c0_i32_1 = arith.constant 0 : i32
    return %arg1, %c0_i32, %c0_i32_0 : i32, i32, i32
  }
  func.func @transform_5(%arg0: i32, %arg1: i32) -> (i32, i32, i32) {
    %c0_i32 = arith.constant 0 : i32
    %c0_i32_0 = arith.constant 0 : i32
    %c0_i32_1 = arith.constant 0 : i32
    return %arg1, %c0_i32, %c0_i32_0 : i32, i32, i32
  }
  func.func @transform_6(%arg0: i32, %arg1: i32) -> (i32, i32, i32) {
    %c0_i32 = arith.constant 0 : i32
    %c0_i32_0 = arith.constant 0 : i32
    %c0_i32_1 = arith.constant 0 : i32
    return %arg0, %c0_i32, %c0_i32_0 : i32, i32, i32
  }
}

</mosaic_0001>

<llo_original>
// kernel: tpu_custom_call.1
$region0: #{tpu_custom_call.1}
  #allocation0 [shape = 'u32[]', space=smem, size = 0x4, offset = 0x4, fixed_abs, tag = 'smem constant byte address 0x4 - core index']
  #allocation1 [shape = 'u32[72,128]{1,0:T(1,128)}', space=vmem, size = 0x9000, scoped, tag = 'internal scratch']
  #allocation2 [shape = 'f32[8,32]{1,0:T(8,128)}', space=vmem, size = 0x1000, scoped, tag = 'scratch operand']
  #allocation3 [shape = 'f32[8,32]{1,0:T(8,128)}', space=vmem, size = 0x1000, scoped, tag = 'scratch operand']
  %s0 = inlined_call_operand.vmem [shape: f32[2,8,32], index: 0, kind: input, shape index: {}]
  %s1 = inlined_call_operand.vmem [shape: f32[1,32], index: 1, kind: input, shape index: {}]
  %s2 = inlined_call_operand.vmem [shape: f32[4,32,8], index: 2, kind: input, shape index: {}]
  %s3 = inlined_call_operand.vmem [shape: f32[4,32,8], index: 3, kind: input, shape index: {}]
  %s4 = inlined_call_operand.vmem [shape: f32[4,32,8], index: 4, kind: input, shape index: {}]
  %s5 = inlined_call_operand.vmem [shape: f32[4,8,32], index: 5, kind: input, shape index: {}]
  %s6 = inlined_call_operand.hbm [shape: f32[2,8,32], index: 6, kind: output, shape index: {}]
  %s7 = sld [smem:[#allocation0]]
  $region65: #{tpu_custom_call.1} parent=0
    _
  %s9 = ssub.s32 1, %s7
  %s10 = scalar_select 0, %s9, %s7
  $region1: #{tpu_custom_call.1} parent=0
    #allocation4 [shape = 'u8[8192]{0}', space=vmem, size = 0x2000, scoped, tag = 'output window, operand 0']
    #allocation5 [shape = 's32[2]{0}', space=sflag, size = 0x8, scoped, tag = 'scoped memory for tpu_custom_call.1']
    %11 = vsyncpa [#allocation5], 0
    %s12 = scalar_lea.sflag [#allocation5], 1
    %13 = vsyncpa %s12, 0
    loop: start=0, step=1, limit=10
    $region2: #{tpu_custom_call.1} parent=1 // loop_pre_header
      _
    $region3: #{tpu_custom_call.1} parent=1 // loop_header
      %s15 = sphi 0, %s19
      %p16 = scmp.ge.s32.totalorder %s15, 10
      %s22 = sphi 0, %s34
      %s23 = sphi 0, %s30
      %s24 = sphi 0, %s22
      %s25 = sphi 0, %s23
      %s26 = sphi 0, %s24
      %s27 = sphi 0, %s25
      %s37 = sphi 0, %s39
      %s40 = sphi 0, %s37
      %s41 = sphi 0, %s40
      %s57 = sphi 0, %s41
      %s61 = sphi 0, %s61
      %s63 = sphi 0, %s61
      %s64 = sphi 0, %s63
      %s78 = sphi 0, %s64
      %s84 = sphi 0, %s86
      %s87 = sphi 0, %s84
      %s88 = sphi 0, %s87
      %s104 = sphi 0, %s88
      %s110 = sphi 0, %s112
      %s113 = sphi 0, %s110
      %s114 = sphi 0, %s113
      %s130 = sphi 0, %s114
      %s136 = sphi 0, %s138
      %s139 = sphi 0, %s136
      %s140 = sphi 0, %s139
      %s156 = sphi 0, %s140
      %s162 = sphi 0, %s164
      %s165 = sphi 0, %s162
      %s166 = sphi 0, %s165
      %s182 = sphi 0, %s166
      %s188 = sphi 0, %s190
      %s191 = sphi 0, %s188
      %s192 = sphi 0, %s191
      %s208 = sphi 0, %s192
    $region4: #{tpu_custom_call.1} parent=1 // loop_header_branch
      %18 = sbr.rel (%p16) target = $region8
    $region5: #{tpu_custom_call.1} parent=1 // loop_body
      %s20 = ssub.s32 %s15, 1
      %s21 = ssub.s32 %s15, 2
      %s28 = sadd.s32 1, %s23
      %p29 = scmp.ge.s32.totalorder %s28, 4
      %s30 = scalar_select %p29, 0, %s28
      %s31 = sadd.s32 1, %s22
      %s32 = scalar_select %p29, %s31, %s22
      %p33 = scmp.ge.s32.totalorder %s32, 2
      %s34 = scalar_select %p33, 0, %s32
      %s35 = ssub.s32 %s22, %s34
      %p36 = scmp.eq.s32.totalorder %s35, 0
      %s38 = sadd.s32 %s37, 1
      %s39 = scalar_select %p36, %s37, %s38
      %p42 = pneg %p36
      %p43 = scmp.eq.s32.totalorder %s15, 7
      %p44 = por %p42, %p43
      %p45 = scmp.ne.s32.totalorder %s37, %s40
      %p46 = scmp.eq.s32.totalorder %s15, 0
      %p47 = por %p45, %p46
      %p48 = scmp.ne.s32.totalorder %s37, %s40
      %p49 = scmp.eq.s32.totalorder %s20, 7
      %p50 = por %p48, %p49
      %p51 = scmp.ne.s32.totalorder %s40, %s41
      %p52 = scmp.eq.s32.totalorder %s20, 0
      %p53 = por %p51, %p52
      %p54 = scmp.ne.s32.totalorder %s40, %s41
      %p55 = scmp.eq.s32.totalorder %s21, 7
      %p56 = por %p54, %p55
      %p58 = scmp.ne.s32.totalorder %s41, %s57
      %p59 = scmp.eq.s32.totalorder %s21, 0
      %p60 = por %p58, %p59
      %s62 = sadd.s32 %s61, 1
      %p65 = scmp.eq.s32.totalorder %s15, 7
      %p66 = scmp.ne.s32.totalorder %s61, %s63
      %p67 = scmp.eq.s32.totalorder %s15, 0
      %p68 = por %p66, %p67
      %p69 = scmp.ne.s32.totalorder %s61, %s63
      %p70 = scmp.eq.s32.totalorder %s20, 7
      %p71 = por %p69, %p70
      %p72 = scmp.ne.s32.totalorder %s63, %s64
      %p73 = scmp.eq.s32.totalorder %s20, 0
      %p74 = por %p72, %p73
      %p75 = scmp.ne.s32.totalorder %s63, %s64
      %p76 = scmp.eq.s32.totalorder %s21, 7
      %p77 = por %p75, %p76
      %p79 = scmp.ne.s32.totalorder %s64, %s78
      %p80 = scmp.eq.s32.totalorder %s21, 0
      %p81 = por %p79, %p80
      %s82 = ssub.s32 %s23, %s30
      %p83 = scmp.eq.s32.totalorder %s82, 0
      %s85 = sadd.s32 %s84, 1
      %s86 = scalar_select %p83, %s84, %s85
      %p89 = pneg %p83
      %p90 = scmp.eq.s32.totalorder %s15, 7
      %p91 = por %p89, %p90
      %p92 = scmp.ne.s32.totalorder %s84, %s87
      %p93 = scmp.eq.s32.totalorder %s15, 0
      %p94 = por %p92, %p93
      %p95 = scmp.ne.s32.totalorder %s84, %s87
      %p96 = scmp.eq.s32.totalorder %s20, 7
      %p97 = por %p95, %p96
      %p98 = scmp.ne.s32.totalorder %s87, %s88
      %p99 = scmp.eq.s32.totalorder %s20, 0
      %p100 = por %p98, %p99
      %p101 = scmp.ne.s32.totalorder %s87, %s88
      %p102 = scmp.eq.s32.totalorder %s21, 7
      %p103 = por %p101, %p102
      %p105 = scmp.ne.s32.totalorder %s88, %s104
      %p106 = scmp.eq.s32.totalorder %s21, 0
      %p107 = por %p105, %p106
      %s108 = ssub.s32 %s23, %s30
      %p109 = scmp.eq.s32.totalorder %s108, 0
      %s111 = sadd.s32 %s110, 1
      %s112 = scalar_select %p109, %s110, %s111
      %p115 = pneg %p109
      %p116 = scmp.eq.s32.totalorder %s15, 7
      %p117 = por %p115, %p116
      %p118 = scmp.ne.s32.totalorder %s110, %s113
      %p119 = scmp.eq.s32.totalorder %s15, 0
      %p120 = por %p118, %p119
      %p121 = scmp.ne.s32.totalorder %s110, %s113
      %p122 = scmp.eq.s32.totalorder %s20, 7
      %p123 = por %p121, %p122
      %p124 = scmp.ne.s32.totalorder %s113, %s114
      %p125 = scmp.eq.s32.totalorder %s20, 0
      %p126 = por %p124, %p125
      %p127 = scmp.ne.s32.totalorder %s113, %s114
      %p128 = scmp.eq.s32.totalorder %s21, 7
      %p129 = por %p127, %p128
      %p131 = scmp.ne.s32.totalorder %s114, %s130
      %p132 = scmp.eq.s32.totalorder %s21, 0
      %p133 = por %p131, %p132
      %s134 = ssub.s32 %s23, %s30
      %p135 = scmp.eq.s32.totalorder %s134, 0
      %s137 = sadd.s32 %s136, 1
      %s138 = scalar_select %p135, %s136, %s137
      %p141 = pneg %p135
      %p142 = scmp.eq.s32.totalorder %s15, 7
      %p143 = por %p141, %p142
      %p144 = scmp.ne.s32.totalorder %s136, %s139
      %p145 = scmp.eq.s32.totalorder %s15, 0
      %p146 = por %p144, %p145
      %p147 = scmp.ne.s32.totalorder %s136, %s139
      %p148 = scmp.eq.s32.totalorder %s20, 7
      %p149 = por %p147, %p148
      %p150 = scmp.ne.s32.totalorder %s139, %s140
      %p151 = scmp.eq.s32.totalorder %s20, 0
      %p152 = por %p150, %p151
      %p153 = scmp.ne.s32.totalorder %s139, %s140
      %p154 = scmp.eq.s32.totalorder %s21, 7
      %p155 = por %p153, %p154
      %p157 = scmp.ne.s32.totalorder %s140, %s156
      %p158 = scmp.eq.s32.totalorder %s21, 0
      %p159 = por %p157, %p158
      %s160 = ssub.s32 %s23, %s30
      %p161 = scmp.eq.s32.totalorder %s160, 0
      %s163 = sadd.s32 %s162, 1
      %s164 = scalar_select %p161, %s162, %s163
      %p167 = pneg %p161
      %p168 = scmp.eq.s32.totalorder %s15, 7
      %p169 = por %p167, %p168
      %p170 = scmp.ne.s32.totalorder %s162, %s165
      %p171 = scmp.eq.s32.totalorder %s15, 0
      %p172 = por %p170, %p171
      %p173 = scmp.ne.s32.totalorder %s162, %s165
      %p174 = scmp.eq.s32.totalorder %s20, 7
      %p175 = por %p173, %p174
      %p176 = scmp.ne.s32.totalorder %s165, %s166
      %p177 = scmp.eq.s32.totalorder %s20, 0
      %p178 = por %p176, %p177
      %p179 = scmp.ne.s32.totalorder %s165, %s166
      %p180 = scmp.eq.s32.totalorder %s21, 7
      %p181 = por %p179, %p180
      %p183 = scmp.ne.s32.totalorder %s166, %s182
      %p184 = scmp.eq.s32.totalorder %s21, 0
      %p185 = por %p183, %p184
      %s186 = ssub.s32 %s22, %s34
      %p187 = scmp.eq.s32.totalorder %s186, 0
      %s189 = sadd.s32 %s188, 1
      %s190 = scalar_select %p187, %s188, %s189
      %p193 = pneg %p187
      %p194 = scmp.eq.s32.totalorder %s15, 7
      %p195 = por %p193, %p194
      %p196 = scmp.ne.s32.totalorder %s188, %s191
      %p197 = scmp.eq.s32.totalorder %s15, 0
      %p198 = por %p196, %p197
      %p199 = scmp.ne.s32.totalorder %s188, %s191
      %p200 = scmp.eq.s32.totalorder %s20, 7
      %p201 = por %p199, %p200
      %p202 = scmp.ne.s32.totalorder %s191, %s192
      %p203 = scmp.eq.s32.totalorder %s20, 0
      %p204 = por %p202, %p203
      %p205 = scmp.ne.s32.totalorder %s191, %s192
      %p206 = scmp.eq.s32.totalorder %s21, 7
      %p207 = por %p205, %p206
      %p209 = scmp.ne.s32.totalorder %s192, %s208
      %p210 = scmp.eq.s32.totalorder %s21, 0
      %p211 = por %p209, %p210
      %p212 = scmp.le.s32.totalorder 1, %s15
      %p213 = scmp.lt.s32.totalorder %s15, 9
      %p214 = pnand %p212, %p213
      %p215 = pneg %p214
      // Predicated region
      $region9: #{tpu_custom_call.1} parent=5 // pred_check
        _
      $region10: #{tpu_custom_call.1} parent=5 // pred_check_branch
        %217 = sbr.rel (%p214) target = $region12
      $region11: #{tpu_custom_call.1} parent=5 // pred_region
        %s218 = ssub.s32 %s15, 1
        // Predicated region
        $region13: #{tpu_custom_call.1} parent=11 // pred_check
          %p219 = pneg %p74
        $region14: #{tpu_custom_call.1} parent=11 // pred_check_branch
          %221 = sbr.rel (%p219) target = $region16
        $region15: #{tpu_custom_call.1} parent=11 // pred_region
          _
        $region16: #{tpu_custom_call.1} parent=11 // pred_fallthru
          _
      $region12: #{tpu_custom_call.1} parent=5 // pred_fallthru
        _
      %p222 = scmp.lt.s32.totalorder %s15, 8
      // Predicated region
      $region17: #{tpu_custom_call.1} parent=5 // pred_check
        %p223 = pneg %p222
      $region18: #{tpu_custom_call.1} parent=5 // pred_check_branch
        %225 = sbr.rel (%p223) target = $region20
      $region19: #{tpu_custom_call.1} parent=5 // pred_region
        // Predicated region
        $region21: #{tpu_custom_call.1} parent=19 // pred_check
          %p226 = pneg %p47
        $region22: #{tpu_custom_call.1} parent=19 // pred_check_branch
          %228 = sbr.rel (%p226) target = $region24
        $region23: #{tpu_custom_call.1} parent=19 // pred_region
          %p229 = scmp.lt.s32.totalorder %s22, 1
          %s230 = scalar_select %p229, %s22, 1
          %s231 = smul.addr %s230, 8
          %s232 = scalar_lea.vmem %s0, %s231
        $region24: #{tpu_custom_call.1} parent=19 // pred_fallthru
          _
        // Predicated region
        $region25: #{tpu_custom_call.1} parent=19 // pred_check
          %p233 = pneg %p94
        $region26: #{tpu_custom_call.1} parent=19 // pred_check_branch
          %235 = sbr.rel (%p233) target = $region28
        $region27: #{tpu_custom_call.1} parent=19 // pred_region
          %p236 = scmp.lt.s32.totalorder %s23, 3
          %s237 = scalar_select %p236, %s23, 3
          %s238 = smul.addr %s237, 4
          %s239 = smul.addr %s238, 8
          %s240 = scalar_lea.vmem %s2, %s239
        $region28: #{tpu_custom_call.1} parent=19 // pred_fallthru
          _
        // Predicated region
        $region29: #{tpu_custom_call.1} parent=19 // pred_check
          %p241 = pneg %p120
        $region30: #{tpu_custom_call.1} parent=19 // pred_check_branch
          %243 = sbr.rel (%p241) target = $region32
        $region31: #{tpu_custom_call.1} parent=19 // pred_region
          %p244 = scmp.lt.s32.totalorder %s23, 3
          %s245 = scalar_select %p244, %s23, 3
          %s246 = smul.addr %s245, 4
          %s247 = smul.addr %s246, 8
          %s248 = scalar_lea.vmem %s3, %s247
        $region32: #{tpu_custom_call.1} parent=19 // pred_fallthru
          _
        // Predicated region
        $region33: #{tpu_custom_call.1} parent=19 // pred_check
          %p249 = pneg %p146
        $region34: #{tpu_custom_call.1} parent=19 // pred_check_branch
          %251 = sbr.rel (%p249) target = $region36
        $region35: #{tpu_custom_call.1} parent=19 // pred_region
          %p252 = scmp.lt.s32.totalorder %s23, 3
          %s253 = scalar_select %p252, %s23, 3
          %s254 = smul.addr %s253, 4
          %s255 = smul.addr %s254, 8
          %s256 = scalar_lea.vmem %s4, %s255
        $region36: #{tpu_custom_call.1} parent=19 // pred_fallthru
          _
        // Predicated region
        $region37: #{tpu_custom_call.1} parent=19 // pred_check
          %p257 = pneg %p172
        $region38: #{tpu_custom_call.1} parent=19 // pred_check_branch
          %259 = sbr.rel (%p257) target = $region40
        $region39: #{tpu_custom_call.1} parent=19 // pred_region
          %p260 = scmp.lt.s32.totalorder %s23, 3
          %s261 = scalar_select %p260, %s23, 3
          %s262 = smul.addr %s261, 8
          %s263 = scalar_lea.vmem %s5, %s262
        $region40: #{tpu_custom_call.1} parent=19 // pred_fallthru
          _
      $region20: #{tpu_custom_call.1} parent=5 // pred_fallthru
        _
      %p264 = scmp.le.s32.totalorder 1, %s15
      %p265 = scmp.lt.s32.totalorder %s15, 9
      %p266 = pnand %p264, %p265
      %p267 = pneg %p266
      // Predicated region
      $region41: #{tpu_custom_call.1} parent=5 // pred_check
        _
      $region42: #{tpu_custom_call.1} parent=5 // pred_check_branch
        %269 = sbr.rel (%p266) target = $region44
      $region43: #{tpu_custom_call.1} parent=5 // pred_region
        %s270 = ssub.s32 %s15, 1
        %p271 = scmp.lt.s32.totalorder %s24, 1
        %s272 = scalar_select %p271, %s24, 1
        %s273 = smul.addr %s272, 8
        %s274 = scalar_lea.vmem %s0, %s273
        %p275 = pneg %p53
        %p276 = pneg %p50
        %p277 = pneg %p74
        %p278 = pneg %p71
        %p279 = scmp.lt.s32.totalorder %s25, 3
        %s280 = scalar_select %p279, %s25, 3
        %s281 = smul.addr %s280, 4
        %s282 = smul.addr %s281, 8
        %s283 = scalar_lea.vmem %s2, %s282
        %p284 = pneg %p100
        %p285 = pneg %p97
        %p286 = scmp.lt.s32.totalorder %s25, 3
        %s287 = scalar_select %p286, %s25, 3
        %s288 = smul.addr %s287, 4
        %s289 = smul.addr %s288, 8
        %s290 = scalar_lea.vmem %s3, %s289
        %p291 = pneg %p126
        %p292 = pneg %p123
        %p293 = scmp.lt.s32.totalorder %s25, 3
        %s294 = scalar_select %p293, %s25, 3
        %s295 = smul.addr %s294, 4
        %s296 = smul.addr %s295, 8
        %s297 = scalar_lea.vmem %s4, %s296
        %p298 = pneg %p152
        %p299 = pneg %p149
        %p300 = scmp.lt.s32.totalorder %s25, 3
        %s301 = scalar_select %p300, %s25, 3
        %s302 = smul.addr %s301, 8
        %s303 = scalar_lea.vmem %s5, %s302
        %p304 = pneg %p178
        %p305 = pneg %p175
        %p306 = pneg %p204
        %p307 = pneg %p201
        %s308 = sand.u32 %s191, 1
        %s309 = scalar_lea.sflag [#allocation5], %s308
        %s310 = sand.u32 %s191, 1
        %s311 = smul.addr %s310, 8
        %s312 = scalar_lea.vmem [#allocation4], %s311
        %p313 = scmp.lt.s32.totalorder %s24, 1
        %s314 = scalar_select %p313, %s24, 1
        %s315 = smul.addr %s314, 8
        %s316 = scalar_lea.vmem %s0, %s315
        %p317 = scmp.lt.s32.totalorder %s25, 3
        %s318 = scalar_select %p317, %s25, 3
        %s319 = smul.addr %s318, 4
        %s320 = smul.addr %s319, 8
        %s321 = scalar_lea.vmem %s2, %s320
        %p322 = scmp.lt.s32.totalorder %s25, 3
        %s323 = scalar_select %p322, %s25, 3
        %s324 = smul.addr %s323, 4
        %s325 = smul.addr %s324, 8
        %s326 = scalar_lea.vmem %s3, %s325
        %p327 = scmp.lt.s32.totalorder %s25, 3
        %s328 = scalar_select %p327, %s25, 3
        %s329 = smul.addr %s328, 4
        %s330 = smul.addr %s329, 8
        %s331 = scalar_lea.vmem %s4, %s330
        %p332 = scmp.lt.s32.totalorder %s25, 3
        %s333 = scalar_select %p332, %s25, 3
        %s334 = smul.addr %s333, 8
        %s335 = scalar_lea.vmem %s5, %s334
        %p336 = scmp.eq.s32.totalorder %s25, 0
        // Predicated region
        $region45: #{tpu_custom_call.1} parent=43 // pred_check
          %p337 = pneg %p336
        $region46: #{tpu_custom_call.1} parent=43 // pred_check_branch
          %339 = sbr.rel (%p337) target = $region48
        $region47: #{tpu_custom_call.1} parent=43 // pred_region
          %v340 = vld [vmem:[%s316] sm:$0xff]
          %v341 = vmul.f32 %v340, %v340
          %vm342 = vcmask 261120
          %v343 = vsel %vm342, %v341, 0.0
          %344 = vadd.xlane.f32.xlu0 %v343
          %v345 = vpop.xlane.xlu0 %344
          %v346 = vrcp.pop 32.0
          %v347 = vmul.f32 32.0, %v346
          %v348 = vsub.f32 1.0, %v347
          %v349 = vmul.f32 %v346, %v348
          %v350 = vadd.f32 %v346, %v349
          %vm351 = vweird.f32 %v346
          %v352 = vsel %vm351, %v346, %v350
          %v353 = vmul.f32 %v345, %v352
          %v354 = vld [vmem:[%s1] sm:$0x1]
          %v356 = vperm.slane %v354, 0
          %v358 = vmul.f32 %v340, %v356
          %v359 = vadd.f32 %v353, 1e-06
          %v360 = vrsqrt.pop %v359
          %v361 = vmul.f32 %v360, %v359
          %v362 = vmul.f32 %v361, %v360
          %v363 = vmul.f32 0.5, %v362
          %v364 = vsub.f32 1.5, %v363
          %v365 = vmul.f32 %v360, %v364
          %vm366 = vweird.f32 %v359
          %vm367 = vweird.f32 %v360
          %vm368 = vmor %vm366, %vm367
          %v369 = vsel %vm368, %v360, %v365
          %v370 = vmul.f32 %v358, %v369
          %371 = vst.msk [vmem:[#allocation2] sm:$0xff] %vm342, %v370
          %372 = vst.msk [vmem:[#allocation3] sm:$0xff] %vm342, 0.0
        $region48: #{tpu_custom_call.1} parent=43 // pred_fallthru
          _
        %v373 = vld [vmem:[#allocation2] sm:$0xff]
        %v374 = vld [vmem:[%s321] sm:$0xff]
        %v375 = vld [vmem:[%s321 + $0x8] sm:$0xff]
        %v376 = vld [vmem:[%s321 + $0x10] sm:$0xff]
        %v377 = vld [vmem:[%s321 + $0x18] sm:$0xff]
        %vm378 = vcmask 261120
        %v380 = vsel %vm378, %v373, 0
        %382 = vmatpush.msra.mxu0 0.0
        %383 = vmatpush.msra.mxu0 0.0
        %384 = vmatpush.msra.mxu0 0.0
        %385 = vmatpush.msra.mxu0 0.0
        %386 = vmatpush.msra.mxu0 0.0
        %387 = vmatpush.msra.mxu0 0.0
        %388 = vmatpush.msra.mxu0 0.0
        %389 = vmatpush.msra.mxu0 0.0
        %390 = vmatpush.msra.mxu0 0.0
        %391 = vmatpush.msra.mxu0 0.0
        %392 = vmatpush.msra.mxu0 0.0
        %393 = vmatpush.msra.mxu0 0.0
        %394 = vmatpush.msra.mxu0 %v377
        %395 = vmatpush.msra.mxu0 %v376
        %396 = vmatpush.msra.mxu0 %v375
        %397 = vmatpush.msra.mxu0 %v374
        %398 = vmatmul.f32.gmra.mxu0 %v380
        %v399 = vpop.f32.mrf.mxu0
        %v400 = vadd.f32 0.0, %v399
        %401 = vdwg.mxu0
        %v402 = vld [vmem:[%s326] sm:$0xff]
        %v403 = vld [vmem:[%s326 + $0x8] sm:$0xff]
        %v404 = vld [vmem:[%s326 + $0x10] sm:$0xff]
        %v405 = vld [vmem:[%s326 + $0x18] sm:$0xff]
        %406 = vmatpush.msra.mxu0 0.0
        %407 = vmatpush.msra.mxu0 0.0
        %408 = vmatpush.msra.mxu0 0.0
        %409 = vmatpush.msra.mxu0 0.0
        %410 = vmatpush.msra.mxu0 0.0
        %411 = vmatpush.msra.mxu0 0.0
        %412 = vmatpush.msra.mxu0 0.0
        %413 = vmatpush.msra.mxu0 0.0
        %414 = vmatpush.msra.mxu0 0.0
        %415 = vmatpush.msra.mxu0 0.0
        %416 = vmatpush.msra.mxu0 0.0
        %417 = vmatpush.msra.mxu0 0.0
        %418 = vmatpush.msra.mxu0 %v405
        %419 = vmatpush.msra.mxu0 %v404
        %420 = vmatpush.msra.mxu0 %v403
        %421 = vmatpush.msra.mxu0 %v402
        %422 = vmatmul.f32.gmra.mxu0 %v380
        %v423 = vpop.f32.mrf.mxu0
        %v424 = vadd.f32 0.0, %v423
        %425 = vdwg.mxu0
        %v426 = vld [vmem:[%s331] sm:$0xff]
        %v427 = vld [vmem:[%s331 + $0x8] sm:$0xff]
        %v428 = vld [vmem:[%s331 + $0x10] sm:$0xff]
        %v429 = vld [vmem:[%s331 + $0x18] sm:$0xff]
        %430 = vmatpush.msra.mxu0 0.0
        %431 = vmatpush.msra.mxu0 0.0
        %432 = vmatpush.msra.mxu0 0.0
        %433 = vmatpush.msra.mxu0 0.0
        %434 = vmatpush.msra.mxu0 0.0
        %435 = vmatpush.msra.mxu0 0.0
        %436 = vmatpush.msra.mxu0 0.0
        %437 = vmatpush.msra.mxu0 0.0
        %438 = vmatpush.msra.mxu0 0.0
        %439 = vmatpush.msra.mxu0 0.0
        %440 = vmatpush.msra.mxu0 0.0
        %441 = vmatpush.msra.mxu0 0.0
        %442 = vmatpush.msra.mxu0 %v429
        %443 = vmatpush.msra.mxu0 %v428
        %444 = vmatpush.msra.mxu0 %v427
        %445 = vmatpush.msra.mxu0 %v426
        %446 = vmatmul.f32.gmra.mxu0 %v380
        %v447 = vpop.f32.mrf.mxu0
        %v448 = vadd.f32 0.0, %v447
        %449 = vdwg.mxu0
        %vm450 = vcmask 64512
        %v452 = vsel %vm450, %v400, 0
        %v455 = vsel %vm450, %v424, 0
        %457 = vmatpush.xpose.msra.mxu0 0.0
        %458 = vmatpush.xpose.msra.mxu0 0.0
        %459 = vmatpush.xpose.msra.mxu0 0.0
        %460 = vmatpush.xpose.msra.mxu0 0.0
        %461 = vmatpush.xpose.msra.mxu0 0.0
        %462 = vmatpush.xpose.msra.mxu0 0.0
        %463 = vmatpush.xpose.msra.mxu0 0.0
        %464 = vmatpush.xpose.msra.mxu0 0.0
        %465 = vmatpush.xpose.msra.mxu0 0.0
        %466 = vmatpush.xpose.msra.mxu0 0.0
        %467 = vmatpush.xpose.msra.mxu0 0.0
        %468 = vmatpush.xpose.msra.mxu0 0.0
        %469 = vmatpush.xpose.msra.mxu0 0.0
        %470 = vmatpush.xpose.msra.mxu0 0.0
        %471 = vmatpush.xpose.msra.mxu0 0.0
        %472 = vmatpush.xpose.msra.mxu0 %v455
        %473 = vmatmul.f32.gmra.mxu0 %v452
        %v474 = vpop.f32.mrf.mxu0
        %v475 = vadd.f32 0.0, %v474
        %476 = vdwg.mxu0
        %v477 = vmul.f32 %v475, 0.35355338
        %v478 = vlaneseq
        %v479 = vshrl.u32 %v478, 7
        %v480 = vlaneseq
        %v481 = vand.u32 %v480, 127
        %vm482 = vcmp.ge.s32.totalorder %v479, %v481
        %v483 = vsel %vm482, %v477, -3.4028235e+38
        %v484 = vsel %vm450, %v483, -inf
        %485 = vmax.xlane.f32.xlu0 %v484
        %v486 = vpop.xlane.xlu0 %485
        %v487 = vsub.f32 %v483, %v486
        %v488 = vmul.f32 %v487, 1.442695
        %v489 = vpow.pop %v488
        %v490 = vsel %vm450, %v489, 0.0
        %491 = vadd.xlane.f32.xlu0 %v490
        %v492 = vpop.xlane.xlu0 %491
        %v493 = vrcp.pop %v492
        %v494 = vmul.f32 %v489, %v493
        %v496 = vsel %vm450, %v494, 0
        %498 = vmatpush.msra.mxu0 0.0
        %499 = vmatpush.msra.mxu0 0.0
        %500 = vmatpush.msra.mxu0 0.0
        %501 = vmatpush.msra.mxu0 0.0
        %502 = vmatpush.msra.mxu0 0.0
        %503 = vmatpush.msra.mxu0 0.0
        %504 = vmatpush.msra.mxu0 0.0
        %505 = vmatpush.msra.mxu0 0.0
        %506 = vmatpush.msra.mxu0 0.0
        %507 = vmatpush.msra.mxu0 0.0
        %508 = vmatpush.msra.mxu0 0.0
        %509 = vmatpush.msra.mxu0 0.0
        %510 = vmatpush.msra.mxu0 0.0
        %511 = vmatpush.msra.mxu0 0.0
        %512 = vmatpush.msra.mxu0 0.0
        %513 = vmatpush.msra.mxu0 %v448
        %514 = vmatmul.f32.gmra.mxu0 %v496
        %v515 = vpop.f32.mrf.mxu0
        %v516 = vadd.f32 0.0, %v515
        %517 = vdwg.mxu0
        %v518 = vld [vmem:[#allocation3] sm:$0xff]
        %v519 = vld [vmem:[%s335] sm:$0xff]
        %v521 = vsel %vm450, %v516, 0
        %523 = vmatpush.msra.mxu0 0.0
        %524 = vmatpush.msra.mxu0 0.0
        %525 = vmatpush.msra.mxu0 0.0
        %526 = vmatpush.msra.mxu0 0.0
        %527 = vmatpush.msra.mxu0 0.0
        %528 = vmatpush.msra.mxu0 0.0
        %529 = vmatpush.msra.mxu0 0.0
        %530 = vmatpush.msra.mxu0 0.0
        %531 = vmatpush.msra.mxu0 0.0
        %532 = vmatpush.msra.mxu0 0.0
        %533 = vmatpush.msra.mxu0 0.0
        %534 = vmatpush.msra.mxu0 0.0
        %535 = vmatpush.msra.mxu0 0.0
        %536 = vmatpush.msra.mxu0 0.0
        %537 = vmatpush.msra.mxu0 0.0
        %538 = vmatpush.msra.mxu0 %v519
        %539 = vmatmul.f32.gmra.mxu0 %v521
        %v540 = vpop.f32.mrf.mxu0
        %v541 = vadd.f32 0.0, %v540
        %542 = vdwg.mxu0
        %v543 = vadd.f32 %v518, %v541
        %544 = vst.msk [vmem:[#allocation3] sm:$0xff] %vm378, %v543
        %p545 = scmp.eq.s32.totalorder %s25, 3
        // Predicated region
        $region49: #{tpu_custom_call.1} parent=43 // pred_check
          %p546 = pneg %p545
        $region50: #{tpu_custom_call.1} parent=43 // pred_check_branch
          %548 = sbr.rel (%p546) target = $region52
        $region51: #{tpu_custom_call.1} parent=43 // pred_region
          %v549 = vld [vmem:[%s316] sm:$0xff]
          %v550 = vld [vmem:[#allocation3] sm:$0xff]
          %v551 = vadd.f32 %v549, %v550
          %552 = vst.msk [vmem:[%s312] sm:$0xff] %vm378, %v551
        $region52: #{tpu_custom_call.1} parent=43 // pred_fallthru
          _
        %s553 = sand.u32 %s191, 1
        %s554 = scalar_lea.sflag [#allocation5], %s553
        %s555 = sand.u32 %s191, 1
        %s556 = smul.addr %s555, 8
        %s557 = scalar_lea.vmem [#allocation4], %s556
        // Predicated region
        $region53: #{tpu_custom_call.1} parent=43 // pred_check
          %p558 = pneg %p201
        $region54: #{tpu_custom_call.1} parent=43 // pred_check_branch
          %560 = sbr.rel (%p558) target = $region56
        $region55: #{tpu_custom_call.1} parent=43 // pred_region
          %562 = vsyncadd %s554, 0
          %s563 = smul.addr %s24, 8
          %s564 = scalar_lea.hbm %s6, %s563
          %s566 = sshll.u32 %s557, 4
          %s567 = int_to_ptr.vmem [resolvable:$true] %s566
          %s568 = sshll.u32 %s564, 4
          %s569 = int_to_ptr.hbm [resolvable:$true] %s568
          %571 = dma.vmem_to_hbm [thread:$0]  %s567, 128, %s569, %s554
        $region56: #{tpu_custom_call.1} parent=43 // pred_fallthru
          _
      $region44: #{tpu_custom_call.1} parent=5 // pred_fallthru
        _
      %p572 = scmp.le.s32.totalorder 2, %s15
      // Predicated region
      $region57: #{tpu_custom_call.1} parent=5 // pred_check
        %p573 = pneg %p572
      $region58: #{tpu_custom_call.1} parent=5 // pred_check_branch
        %575 = sbr.rel (%p573) target = $region60
      $region59: #{tpu_custom_call.1} parent=5 // pred_region
        %s576 = ssub.s32 %s15, 2
        // Predicated region
        $region61: #{tpu_custom_call.1} parent=59 // pred_check
          %p577 = pneg %p207
        $region62: #{tpu_custom_call.1} parent=59 // pred_check_branch
          %579 = sbr.rel (%p577) target = $region64
        $region63: #{tpu_custom_call.1} parent=59 // pred_region
          %s580 = sand.u32 %s192, 1
          %s581 = scalar_lea.sflag [#allocation5], %s580
          %s582 = sand.u32 %s192, 1
          %s583 = smul.addr %s582, 8
          %s584 = scalar_lea.vmem [#allocation4], %s583
          %586 = dma.done %s581, 128
        $region64: #{tpu_custom_call.1} parent=59 // pred_fallthru
          _
      $region60: #{tpu_custom_call.1} parent=5 // pred_fallthru
        _
    $region6: #{tpu_custom_call.1} parent=1 // loop_footer
      %s19 = sadd.s32 1, %s15
    $region7: #{tpu_custom_call.1} parent=1 // loop_footer_branch
      %14 = sbr.rel target = $region3
    $region8: #{tpu_custom_call.1} parent=1 // loop_exit
      _
    %587 = vsyncpa [#allocation5], 1
    %s588 = scalar_lea.sflag [#allocation5], 1
    %589 = vsyncpa %s588, 1

</llo_original>
